<compile_context>
chip_gen: v5e
topology: v5e:2x2
jax: 0.10.0
libtpu: 0.0.40
codegen_flags: <defaults>
</compile_context>

<pallas_src>
import math

import jax
import jax.numpy as jnp
from jax.experimental import pallas as pl
from jax.experimental.pallas import tpu as pltpu


# --------------------------------------------------------------------------
# Kernels
# --------------------------------------------------------------------------
def _support_kernel(x_ref, w_ref, s_ref):
    # support tile = x_tile @ W   (f32 MXU accumulate, stored as compute dtype)
    s_ref[...] = jnp.dot(
        x_ref[...], w_ref[...], preferred_element_type=jnp.float32
    ).astype(s_ref.dtype)


def _aggregate_kernel(adj_ref, s_ref, o_ref, acc_ref):
    # out[i] = sum_k adj[i, k] @ support[k]
    @pl.when(pl.program_id(1) == 0)
    def _init():
        acc_ref[...] = jnp.zeros_like(acc_ref)

    acc_ref[...] += jnp.dot(
        adj_ref[...], s_ref[...], preferred_element_type=jnp.float32
    )

    @pl.when(pl.program_id(1) == pl.num_programs(1) - 1)
    def _store():
        o_ref[...] = acc_ref[...].astype(o_ref.dtype)


# --------------------------------------------------------------------------
# Wrapper
# --------------------------------------------------------------------------
def _round_up(a: int, b: int) -> int:
    return (a + b - 1) // b * b


def _pick_tile(n_pad: int, preferred: int) -> int:
    """Largest multiple of 128 that divides n_pad and is <= preferred."""
    t = min(_round_up(preferred, 128), n_pad)
    while n_pad % t:
        t -= 128
    return t


def gcn_layer(
    adj: jax.Array,
    x: jax.Array,
    weights: jax.Array,
    *,
    tile_m: int = 512,
    tile_k: int = 512,
    compute_dtype=jnp.bfloat16,
) -> jax.Array:
    """output = adj @ (x @ weights), matching GCNLayer.forward (bias=False)."""
    n, d_in = x.shape
    d_in_w, d_out = weights.shape
    assert adj.shape == (n, n)
    assert d_in_w == d_in
    out_dtype = x.dtype

    # ---- padding for layout ------------------------------------------------
    # Lane-dense output: pad D_out up to a multiple of 128 (unmasked stores,
    # full MXU N-lane utilization); sliced back at the end.
    d_out_p = _round_up(d_out, 128)
    # Node dimension padded to a multiple of 128; tiles divide n_pad exactly.
    n_pad = _round_up(n, 128)
    tm = _pick_tile(n_pad, tile_m)
    tk = _pick_tile(n_pad, tile_k)

    adj_p = adj.astype(compute_dtype)
    x_p = x
    w_p = weights
    if n_pad != n:
        adj_p = jnp.pad(adj_p, ((0, n_pad - n), (0, n_pad - n)))
        x_p = jnp.pad(x_p, ((0, n_pad - n), (0, 0)))
    if d_out_p != d_out:
        w_p = jnp.pad(w_p, ((0, 0), (0, d_out_p - d_out)))

    # ---- kernel 1: support = x @ W  (hoisted, computed exactly once) -------
    support = pl.pallas_call(
        _support_kernel,
        out_shape=jax.ShapeDtypeStruct((n_pad, d_out_p), compute_dtype),
        grid_spec=pltpu.PrefetchScalarGridSpec(
            num_scalar_prefetch=0,
            grid=(n_pad // tm,),
            in_specs=[
                pl.BlockSpec((tm, d_in), lambda i: (i, 0)),        # x row tile
                pl.BlockSpec((d_in, d_out_p), lambda i: (0, 0)),   # W, resident
            ],
            out_specs=pl.BlockSpec((tm, d_out_p), lambda i: (i, 0)),
        ),
        compiler_params=pltpu.CompilerParams(
            dimension_semantics=("parallel",),
        ),
    )(x_p, w_p)

    # ---- kernel 2: out = adj @ support  (tiled, k-reduction) ---------------
    n_k = n_pad // tk
    if n_k >= 3:
        # Deeper buffering on the dominant (adj) HBM stream.
        adj_spec = pl.BlockSpec(
            (tm, tk), lambda i, k: (i, k),
            pipeline_mode=pl.Buffered(buffer_count=3),
        )
    else:
        adj_spec = pl.BlockSpec((tm, tk), lambda i, k: (i, k))

    itemsize_c = jnp.dtype(compute_dtype).itemsize
    itemsize_o = jnp.dtype(out_dtype).itemsize
    cost = pl.CostEstimate(
        flops=2 * n_pad * n_pad * d_out_p,
        transcendentals=0,
        bytes_accessed=(
            n_pad * n_pad * itemsize_c          # adj
            + n_pad * d_out_p * itemsize_c      # support (re-read per row tile)
            + n_pad * d_out_p * itemsize_o      # out
        ),
    )

    out_p = pl.pallas_call(
        _aggregate_kernel,
        out_shape=jax.ShapeDtypeStruct((n_pad, d_out_p), out_dtype),
        grid_spec=pltpu.PrefetchScalarGridSpec(
            num_scalar_prefetch=0,
            grid=(n_pad // tm, n_k),
            in_specs=[
                adj_spec,                                          # adj tile
                pl.BlockSpec((tk, d_out_p), lambda i, k: (k, 0)),  # support tile
            ],
            out_specs=pl.BlockSpec((tm, d_out_p), lambda i, k: (i, 0)),
            scratch_shapes=[pltpu.VMEM((tm, d_out_p), jnp.float32)],
        ),
        compiler_params=pltpu.CompilerParams(
            dimension_semantics=("parallel", "arbitrary"),
            vmem_limit_bytes=48 * 1024 * 1024,
        ),
        cost_estimate=cost,
    )(adj_p, support)

    return out_p[:n, :d_out]


# --------------------------------------------------------------------------
# Demo / self-check
# --------------------------------------------------------------------------
if __name__ == "__main__":
    # GCNLayer(input_dim=64, output_dim=32), N=128 nodes, bias=False.
    N, D_IN, D_OUT = 128, 64, 32

    key = jax.random.PRNGKey(0)
    k_adj, k_x, k_w = jax.random.split(key, 3)

    # Deterministic "reset_parameters": uniform(-std, std), std = sqrt(output_dim)
    std = math.sqrt(D_OUT)
    weights = jax.random.uniform(
        k_w, (D_IN, D_OUT), dtype=jnp.float32, minval=-std, maxval=std
    )

    # Synthetic inputs: row-normalized adjacency (with self-loops) and features.
    raw = jax.random.uniform(k_adj, (N, N), dtype=jnp.float32)
    adj = (raw > 0.9).astype(jnp.float32) + jnp.eye(N, dtype=jnp.float32)
    adj = adj / jnp.sum(adj, axis=-1, keepdims=True)

    x = jax.random.normal(k_x, (N, D_IN), dtype=jnp.float32)

    out = gcn_layer(adj, x, weights)
    jax.block_until_ready(out)

    # Reference of the PyTorch forward in plain JAX (pure f32).
    ref = adj @ (x @ weights)
    assert out.shape == (N, D_OUT)
    # adj/support are streamed in bf16 (f32 MXU accumulation), so compare at
    # bf16-level tolerance against the exact f32 reference.
    max_err = float(jnp.max(jnp.abs(out - ref)))
    assert jnp.allclose(out, ref, atol=0.3, rtol=3e-2), max_err

    print("KERNEL_OK")
</pallas_src>

<mosaic_0001>
module attributes {stable_mosaic.version = 11 : i64} {
  func.func @_support_kernel(%arg0: i32, %arg1: memref<128x64xf32, #tpu.memory_space<vmem>>, %arg2: memref<64x128xf32, #tpu.memory_space<vmem>>, %arg3: memref<128x128xbf16, #tpu.memory_space<vmem>>) attributes {dimension_semantics = [#tpu.dimension_semantics<parallel>], iteration_bounds = array<i64: 1>, scalar_prefetch = 0 : i64, scratch_operands = 0 : i64, tpu.core_type = #tpu.core_type<tc>, window_params = [{transform_indices = @transform_0, window_bounds = array<i64: 128, 64>}, {pipeline_mode = #tpu.pipeline_mode<synchronous>, transform_indices = @transform_1, window_bounds = array<i64: 64, 128>}, {transform_indices = @transform_2, window_bounds = array<i64: 128, 128>}]} {
    %c0 = arith.constant 0 : index
    %c0_0 = arith.constant 0 : index
    %0 = vector.load %arg1[%c0, %c0_0] : memref<128x64xf32, #tpu.memory_space<vmem>>, vector<128x64xf32>
    %c0_1 = arith.constant 0 : index
    %c0_2 = arith.constant 0 : index
    %1 = vector.load %arg2[%c0_1, %c0_2] : memref<64x128xf32, #tpu.memory_space<vmem>>, vector<64x128xf32>
    %cst = arith.constant dense<0.000000e+00> : vector<128x128xf32>
    %2 = tpu.matmul %0, %1, %cst {dimension_numbers = #tpu.dot_dimension_numbers<[1], [0], [0], [1], [0, 0, 1, 1], [], []>} : vector<128x64xf32>, vector<64x128xf32>, vector<128x128xf32> -> vector<128x128xf32>
    %3 = arith.truncf %2 : vector<128x128xf32> to vector<128x128xbf16>
    %c0_3 = arith.constant 0 : index
    %c0_4 = arith.constant 0 : index
    %4 = vector.load %arg3[%c0_3, %c0_4] : memref<128x128xbf16, #tpu.memory_space<vmem>>, vector<128x128xbf16>
    tpu.vector_store %arg3[%c0_3, %c0_4], %3 {strides = array<i32>} : memref<128x128xbf16, #tpu.memory_space<vmem>>, vector<128x128xbf16>,
    return
  }
  func.func @transform_0(%arg0: i32) -> (i32, i32) {
    %c0_i32 = arith.constant 0 : i32
    %c0_i32_0 = arith.constant 0 : i32
    return %arg0, %c0_i32 : i32, i32
  }
  func.func @transform_1(%arg0: i32) -> (i32, i32) {
    %c0_i32 = arith.constant 0 : i32
    %c0_i32_0 = arith.constant 0 : i32
    %c0_i32_1 = arith.constant 0 : i32
    return %c0_i32, %c0_i32_0 : i32, i32
  }
  func.func @transform_2(%arg0: i32) -> (i32, i32) {
    %c0_i32 = arith.constant 0 : i32
    %c0_i32_0 = arith.constant 0 : i32
    return %arg0, %c0_i32 : i32, i32
  }
}

</mosaic_0001>

<llo_original>
// kernel: tpu_custom_call.1
$region0: #{tpu_custom_call.1}
  #allocation0 [shape = 'u32[]', space=smem, size = 0x4, offset = 0x4, fixed_abs, tag = 'smem constant byte address 0x4 - core index']
  #allocation1 [shape = 'u32[72,128]{1,0:T(1,128)}', space=vmem, size = 0x9000, scoped, tag = 'internal scratch']
  %s0 = inlined_call_operand.vmem [shape: f32[128,64], index: 0, kind: input, shape index: {}]
  %s1 = inlined_call_operand.vmem [shape: f32[64,128], index: 1, kind: input, shape index: {}]
  %s2 = inlined_call_operand.hbm [shape: bf16[128,128], index: 2, kind: output, shape index: {}]
  %s3 = sld [smem:[#allocation0]]
  $region18: #{tpu_custom_call.1} parent=0
    _
  %s5 = ssub.s32 1, %s3
  %s6 = scalar_select 0, %s5, %s3
  $region1: #{tpu_custom_call.1} parent=0
    #allocation2 [shape = 'u8[32768]{0}', space=vmem, size = 0x8000, scoped, tag = 'output window, operand 0, single buffered']
    #allocation3 [shape = 's32[1]{0}', space=sflag, size = 0x4, scoped, tag = 'scoped memory for tpu_custom_call.1']
    %7 = vsyncpa [#allocation3], 0
    // Predicated region
    $region2: #{tpu_custom_call.1} parent=1 // pred_check
      _
    $region3: #{tpu_custom_call.1} parent=1 // pred_check_branch
      %9 = sbr.rel (0) target = $region5
    $region4: #{tpu_custom_call.1} parent=1 // pred_region
      _
    $region5: #{tpu_custom_call.1} parent=1 // pred_fallthru
      _
    // Predicated region
    $region6: #{tpu_custom_call.1} parent=1 // pred_check
      _
    $region7: #{tpu_custom_call.1} parent=1 // pred_check_branch
      %11 = sbr.rel (0) target = $region9
    $region8: #{tpu_custom_call.1} parent=1 // pred_region
      _
    $region9: #{tpu_custom_call.1} parent=1 // pred_fallthru
      _
    %v12 = vld [vmem:[%s0] sm:$0xff]
    %v13 = vld [vmem:[%s0 + $0x8] sm:$0xff]
    %v14 = vld [vmem:[%s0 + $0x10] sm:$0xff]
    %v15 = vld [vmem:[%s0 + $0x18] sm:$0xff]
    %v16 = vld [vmem:[%s0 + $0x20] sm:$0xff]
    %v17 = vld [vmem:[%s0 + $0x28] sm:$0xff]
    %v18 = vld [vmem:[%s0 + $0x30] sm:$0xff]
    %v19 = vld [vmem:[%s0 + $0x38] sm:$0xff]
    %v20 = vld [vmem:[%s0 + $0x40] sm:$0xff]
    %v21 = vld [vmem:[%s0 + $0x48] sm:$0xff]
    %v22 = vld [vmem:[%s0 + $0x50] sm:$0xff]
    %v23 = vld [vmem:[%s0 + $0x58] sm:$0xff]
    %v24 = vld [vmem:[%s0 + $0x60] sm:$0xff]
    %v25 = vld [vmem:[%s0 + $0x68] sm:$0xff]
    %v26 = vld [vmem:[%s0 + $0x70] sm:$0xff]
    %v27 = vld [vmem:[%s0 + $0x78] sm:$0xff]
    %v28 = vld [vmem:[%s1] sm:$0xff]
    %v29 = vld [vmem:[%s1 + $0x8] sm:$0xff]
    %v30 = vld [vmem:[%s1 + $0x10] sm:$0xff]
    %v31 = vld [vmem:[%s1 + $0x18] sm:$0xff]
    %v32 = vld [vmem:[%s1 + $0x20] sm:$0xff]
    %v33 = vld [vmem:[%s1 + $0x28] sm:$0xff]
    %v34 = vld [vmem:[%s1 + $0x30] sm:$0xff]
    %v35 = vld [vmem:[%s1 + $0x38] sm:$0xff]
    %vm36 = vcmask 523264
    %v38 = vsel %vm36, %v12, 0
    %v41 = vsel %vm36, %v13, 0
    %v44 = vsel %vm36, %v14, 0
    %v47 = vsel %vm36, %v15, 0
    %v50 = vsel %vm36, %v16, 0
    %v53 = vsel %vm36, %v17, 0
    %v56 = vsel %vm36, %v18, 0
    %v59 = vsel %vm36, %v19, 0
    %v62 = vsel %vm36, %v20, 0
    %v65 = vsel %vm36, %v21, 0
    %v68 = vsel %vm36, %v22, 0
    %v71 = vsel %vm36, %v23, 0
    %v74 = vsel %vm36, %v24, 0
    %v77 = vsel %vm36, %v25, 0
    %v80 = vsel %vm36, %v26, 0
    %v83 = vsel %vm36, %v27, 0
    %85 = vmatpush.msra.mxu0 0.0
    %86 = vmatpush.msra.mxu0 0.0
    %87 = vmatpush.msra.mxu0 0.0
    %88 = vmatpush.msra.mxu0 0.0
    %89 = vmatpush.msra.mxu0 0.0
    %90 = vmatpush.msra.mxu0 0.0
    %91 = vmatpush.msra.mxu0 0.0
    %92 = vmatpush.msra.mxu0 0.0
    %93 = vmatpush.msra.mxu0 %v35
    %94 = vmatpush.msra.mxu0 %v34
    %95 = vmatpush.msra.mxu0 %v33
    %96 = vmatpush.msra.mxu0 %v32
    %97 = vmatpush.msra.mxu0 %v31
    %98 = vmatpush.msra.mxu0 %v30
    %99 = vmatpush.msra.mxu0 %v29
    %100 = vmatpush.msra.mxu0 %v28
    %101 = vmatmul.f32.gmra.mxu0 %v38
    %v102 = vpop.f32.mrf.mxu0
    %v103 = vadd.f32 0.0, %v102
    %104 = vmatmul.f32.gmra.mxu0 %v41
    %v105 = vpop.f32.mrf.mxu0
    %v106 = vadd.f32 0.0, %v105
    %107 = vmatmul.f32.gmra.mxu0 %v44
    %v108 = vpop.f32.mrf.mxu0
    %v109 = vadd.f32 0.0, %v108
    %110 = vmatmul.f32.gmra.mxu0 %v47
    %v111 = vpop.f32.mrf.mxu0
    %v112 = vadd.f32 0.0, %v111
    %113 = vmatmul.f32.gmra.mxu0 %v50
    %v114 = vpop.f32.mrf.mxu0
    %v115 = vadd.f32 0.0, %v114
    %116 = vmatmul.f32.gmra.mxu0 %v53
    %v117 = vpop.f32.mrf.mxu0
    %v118 = vadd.f32 0.0, %v117
    %119 = vmatmul.f32.gmra.mxu0 %v56
    %v120 = vpop.f32.mrf.mxu0
    %v121 = vadd.f32 0.0, %v120
    %122 = vmatmul.f32.gmra.mxu0 %v59
    %v123 = vpop.f32.mrf.mxu0
    %v124 = vadd.f32 0.0, %v123
    %125 = vmatmul.f32.gmra.mxu0 %v62
    %v126 = vpop.f32.mrf.mxu0
    %v127 = vadd.f32 0.0, %v126
    %128 = vmatmul.f32.gmra.mxu0 %v65
    %v129 = vpop.f32.mrf.mxu0
    %v130 = vadd.f32 0.0, %v129
    %131 = vmatmul.f32.gmra.mxu0 %v68
    %v132 = vpop.f32.mrf.mxu0
    %v133 = vadd.f32 0.0, %v132
    %134 = vmatmul.f32.gmra.mxu0 %v71
    %v135 = vpop.f32.mrf.mxu0
    %v136 = vadd.f32 0.0, %v135
    %137 = vmatmul.f32.gmra.mxu0 %v74
    %v138 = vpop.f32.mrf.mxu0
    %v139 = vadd.f32 0.0, %v138
    %140 = vmatmul.f32.gmra.mxu0 %v77
    %v141 = vpop.f32.mrf.mxu0
    %v142 = vadd.f32 0.0, %v141
    %143 = vmatmul.f32.gmra.mxu0 %v80
    %v144 = vpop.f32.mrf.mxu0
    %v145 = vadd.f32 0.0, %v144
    %146 = vmatmul.f32.gmra.mxu0 %v83
    %v147 = vpop.f32.mrf.mxu0
    %v148 = vadd.f32 0.0, %v147
    %149 = vdwg.mxu0
    %v150 = vpack.c.bf16 %v103, %v103
    %v151 = vpack.c.bf16 %v106, %v106
    %v152 = vpack.c.bf16 %v109, %v109
    %v153 = vpack.c.bf16 %v112, %v112
    %v154 = vpack.c.bf16 %v115, %v115
    %v155 = vpack.c.bf16 %v118, %v118
    %v156 = vpack.c.bf16 %v121, %v121
    %v157 = vpack.c.bf16 %v124, %v124
    %v158 = vpack.c.bf16 %v127, %v127
    %v159 = vpack.c.bf16 %v130, %v130
    %v160 = vpack.c.bf16 %v133, %v133
    %v161 = vpack.c.bf16 %v136, %v136
    %v162 = vpack.c.bf16 %v139, %v139
    %v163 = vpack.c.bf16 %v142, %v142
    %v164 = vpack.c.bf16 %v145, %v145
    %v165 = vpack.c.bf16 %v148, %v148
    %166 = vst [vmem:[#allocation2] sm:$0xf] %v150
    %167 = vst [vmem:[#allocation2 + $0x4] sm:$0xf] %v151
    %168 = vst [vmem:[#allocation2 + $0x8] sm:$0xf] %v152
    %169 = vst [vmem:[#allocation2 + $0xc] sm:$0xf] %v153
    %170 = vst [vmem:[#allocation2 + $0x10] sm:$0xf] %v154
    %171 = vst [vmem:[#allocation2 + $0x14] sm:$0xf] %v155
    %172 = vst [vmem:[#allocation2 + $0x18] sm:$0xf] %v156
    %173 = vst [vmem:[#allocation2 + $0x1c] sm:$0xf] %v157
    %174 = vst [vmem:[#allocation2 + $0x20] sm:$0xf] %v158
    %175 = vst [vmem:[#allocation2 + $0x24] sm:$0xf] %v159
    %176 = vst [vmem:[#allocation2 + $0x28] sm:$0xf] %v160
    %177 = vst [vmem:[#allocation2 + $0x2c] sm:$0xf] %v161
    %178 = vst [vmem:[#allocation2 + $0x30] sm:$0xf] %v162
    %179 = vst [vmem:[#allocation2 + $0x34] sm:$0xf] %v163
    %180 = vst [vmem:[#allocation2 + $0x38] sm:$0xf] %v164
    %181 = vst [vmem:[#allocation2 + $0x3c] sm:$0xf] %v165
    // Predicated region
    $region10: #{tpu_custom_call.1} parent=1 // pred_check
      _
    $region11: #{tpu_custom_call.1} parent=1 // pred_check_branch
      %183 = sbr.rel (0) target = $region13
    $region12: #{tpu_custom_call.1} parent=1 // pred_region
      %185 = vsyncadd [#allocation3], 0
      %s186 = sshll.u32 [#allocation2], 4
      %s187 = int_to_ptr.vmem [resolvable:$true] %s186
      %s188 = sshll.u32 %s2, 4
      %s189 = int_to_ptr.hbm [resolvable:$true] %s188
      %194 = dma.vmem_to_hbm [thread:$0]  %s187, 1024, %s189, [#allocation3], 64, 64, 4
    $region13: #{tpu_custom_call.1} parent=1 // pred_fallthru
      _
    // Predicated region
    $region14: #{tpu_custom_call.1} parent=1 // pred_check
      _
    $region15: #{tpu_custom_call.1} parent=1 // pred_check_branch
      %196 = sbr.rel (0) target = $region17
    $region16: #{tpu_custom_call.1} parent=1 // pred_region
      %198 = dma.done [#allocation3], 1024
    $region17: #{tpu_custom_call.1} parent=1 // pred_fallthru
      _
    %199 = vsyncpa [#allocation3], 1

</llo_original>
